<compile_context>
chip_gen: v6e
topology: v6e:2x2x1
jax: 0.10.0
libtpu: 0.0.40
codegen_flags: <defaults>
</compile_context>

<pallas_src>
import math

import jax
import jax.numpy as jnp
from jax.experimental import pallas as pl
from jax.experimental.pallas import tpu as pltpu


def _h_hat_kernel(x_ref, g_ref, wn_ref, wg_ref, o_ref):
    """One (batch, node-tile) output block of  out = x @ Wn + broadcast(g @ Wg).

    x_ref : (1, tnode, K)   node features, native dtype (cast to bf16 in-kernel)
    g_ref : (1, 1, K)       per-batch max-pooled features
    wn_ref: (K, Dout) bf16  node-projection weight, (in, out) layout, VMEM-resident
    wg_ref: (K, Dout) bf16  graph-projection weight, (in, out) layout, VMEM-resident
    o_ref : (1, tnode, Dout)
    """
    x = x_ref[0].astype(jnp.bfloat16)
    g = g_ref[0].astype(jnp.bfloat16)

    # Canonical (M,K)@(K,N) MXU matmul, bf16 inputs / f32 accumulation.
    node = jnp.dot(x, wn_ref[...], preferred_element_type=jnp.float32)
    # Degenerate 1-row matmul, recomputed per node tile instead of a separate
    # pallas_call + HBM round trip (cost <= 1/tnode of the node matmul).
    graph = jnp.dot(g, wg_ref[...], preferred_element_type=jnp.float32)

    o_ref[0] = (node + graph).astype(o_ref.dtype)


def _choose_node_tile(n_nodes, batch, requested=256, align=16):
    """Node tile: full dim when it fits (always a legal block extent), otherwise
    an `align`-multiple <= requested (partial trailing block handled by cdiv).
    When batch == 1, split the node axis into >= 2 tiles so a 2-TensorCore chip
    (v7x) always sees >= 2 parallel grid steps."""
    requested = max(align, (requested // align) * align)
    if batch >= 2:
        return n_nodes if n_nodes <= requested else requested
    half = -(-n_nodes // 2)
    t = min(requested, ((half + align - 1) // align) * align)
    if t >= n_nodes:
        return n_nodes          # too small to split usefully; single full tile
    return t


def _vmem_budget(working_set_bytes):
    """Per-generation clamp of vmem_limit_bytes (v7x has only 64 MiB / TC)."""
    try:
        physical = int(pltpu.get_tpu_info().vmem_capacity_bytes)
    except Exception:
        physical = 64 * 1024 * 1024      # v7x per-TC physical: safe lower bound
    assert working_set_bytes < int(0.8 * physical), (
        "resident-weight layout exceeds VMEM; re-introduce K/N tiling for this "
        "input_dim")
    if working_set_bytes <= 24 * 1024 * 1024:
        return None                      # scoped default suffices on all gens
    return min(int(working_set_bytes * 1.25) + (2 << 20), int(physical * 0.8))


def nns_decoder_h_hat(h_wave, w_node, w_graph, *, tnode=256, out_dtype=None):
    """h_hat = h_wave @ w_node^T + (max_n h_wave) @ w_graph^T, one fused kernel.

    Weights are PyTorch nn.Linear(D, D, bias=False) weights in (out, in) layout.
    """
    B, N, D = h_wave.shape
    Dout, K = w_node.shape
    assert K == D and w_graph.shape == (Dout, K)
    if out_dtype is None:
        out_dtype = h_wave.dtype

    # One-time weight prep (tiny DxD ops, amortized over the whole grid):
    # transpose to (in, out) and cast to bf16 ONCE.  The big activation tensor
    # is NOT pre-cast — it is read in its native dtype and cast per-tile inside
    # the kernel, so no extra HBM convert pass touches (B, N, D).
    wn_t = jnp.asarray(w_node.T, dtype=jnp.bfloat16)
    wg_t = jnp.asarray(w_graph.T, dtype=jnp.bfloat16)

    # Per-batch max pool over nodes: one tiny XLA reduction, not worth a kernel.
    g = jnp.max(h_wave, axis=1, keepdims=True)                       # (B, 1, D)

    tnode = _choose_node_tile(N, B, tnode)
    grid = (B, pl.cdiv(N, tnode))

    x_isz = jnp.dtype(h_wave.dtype).itemsize
    o_isz = jnp.dtype(out_dtype).itemsize
    # Double-buffered streams (x, g, out) + two resident bf16 weights
    # (conservatively counted double-buffered as well).
    working_set = (2 * (tnode * K * x_isz + K * x_isz + tnode * Dout * o_isz)
                   + 2 * (2 * K * Dout * 2))
    vmem_limit = _vmem_budget(working_set)

    n_steps = B * grid[1]
    flops = 2 * B * N * K * Dout + 2 * n_steps * K * Dout
    bytes_accessed = (B * N * K * x_isz          # h_wave
                      + B * K * x_isz            # pooled g
                      + 2 * K * Dout * 2         # both bf16 weights (one fetch)
                      + B * N * Dout * o_isz)    # output

    return pl.pallas_call(
        _h_hat_kernel,
        out_shape=jax.ShapeDtypeStruct((B, N, Dout), out_dtype),
        grid_spec=pltpu.PrefetchScalarGridSpec(
            num_scalar_prefetch=0,
            grid=grid,
            in_specs=[
                pl.BlockSpec((1, tnode, K), lambda b, i: (b, i, 0)),
                pl.BlockSpec((1, 1, K), lambda b, i: (b, 0, 0)),    # changes with b only
                pl.BlockSpec((K, Dout), lambda b, i: (0, 0)),       # VMEM-resident
                pl.BlockSpec((K, Dout), lambda b, i: (0, 0)),       # VMEM-resident
            ],
            out_specs=pl.BlockSpec((1, tnode, Dout), lambda b, i: (b, i, 0)),
        ),
        compiler_params=pltpu.CompilerParams(
            dimension_semantics=("parallel", "parallel"),
            vmem_limit_bytes=vmem_limit,
        ),
        cost_estimate=pl.CostEstimate(
            flops=flops, transcendentals=0, bytes_accessed=bytes_accessed),
    )(h_wave, g, wn_t, wg_t)


def _reference_h_hat_exact(h_wave, w_node, w_graph):
    """Exact f32 reference (PyTorch forward semantics)."""
    node = jnp.einsum("bnd,od->bno", h_wave, w_node)
    graph = jnp.einsum("bd,od->bo", jnp.max(h_wave, axis=1), w_graph)
    return node + graph[:, None, :]


def _reference_h_hat_bf16(h_wave, w_node, w_graph):
    """Reference with the kernel's numerics: bf16 MXU inputs, f32 accumulate/add."""
    f32 = jnp.float32
    hw = h_wave.astype(jnp.bfloat16).astype(f32)
    g = jnp.max(h_wave, axis=1).astype(jnp.bfloat16).astype(f32)
    wn = w_node.astype(jnp.bfloat16).astype(f32)
    wg = w_graph.astype(jnp.bfloat16).astype(f32)
    node = jnp.einsum("bnd,od->bno", hw, wn)
    graph = jnp.einsum("bd,od->bo", g, wg)
    return node + graph[:, None, :]


if __name__ == "__main__":
    # Shapes consistent with NNSDecoder: batch=2, graph_size_plus1=65
    # (depot + 32 pickup/delivery pairs), input_dim=128.
    B, GP1, D = 2, 65, 128
    key = jax.random.PRNGKey(0)
    k_h, k_wn, k_wg = jax.random.split(key, 3)

    h_wave = jax.random.normal(k_h, (B, GP1, D), dtype=jnp.float32)
    bound = 1.0 / math.sqrt(D)        # matches init_parameters() uniform(-stdv, stdv)
    w_node = jax.random.uniform(k_wn, (D, D), minval=-bound, maxval=bound,
                                dtype=jnp.float32)   # (out, in), bias=False
    w_graph = jax.random.uniform(k_wg, (D, D), minval=-bound, maxval=bound,
                                 dtype=jnp.float32)  # (out, in), bias=False

    ref_bf = _reference_h_hat_bf16(h_wave, w_node, w_graph)
    ref_f32 = _reference_h_hat_exact(h_wave, w_node, w_graph)

    # 1) f32 output, B=2 (batch axis provides the parallel grid steps).
    h_hat = jax.jit(nns_decoder_h_hat)(h_wave, w_node, w_graph)
    h_hat = jax.block_until_ready(h_hat)
    assert h_hat.shape == (B, GP1, D)
    assert jnp.allclose(h_hat, ref_bf, atol=2e-3, rtol=2e-3), "mismatch vs bf16-numerics reference"
    assert jnp.allclose(h_hat, ref_f32, atol=3e-2, rtol=3e-2), "mismatch vs exact f32 reference"

    # 2) bf16 output path (halves the dominant HBM writeback; f32 accumulate kept).
    h_hat_bf = jax.jit(
        lambda a, b, c: nns_decoder_h_hat(a, b, c, out_dtype=jnp.bfloat16)
    )(h_wave, w_node, w_graph)
    h_hat_bf = jax.block_until_ready(h_hat_bf)
    assert h_hat_bf.dtype == jnp.bfloat16
    assert jnp.allclose(h_hat_bf.astype(jnp.float32), ref_bf, atol=3e-2, rtol=3e-2), \
        "mismatch on bf16-output path"

    # 3) B == 1: node axis is split into >= 2 tiles (v7x second-core coverage),
    #    exercising the partial trailing block path.
    h_hat_b1 = jax.jit(nns_decoder_h_hat)(h_wave[:1], w_node, w_graph)
    h_hat_b1 = jax.block_until_ready(h_hat_b1)
    assert h_hat_b1.shape == (1, GP1, D)
    assert jnp.allclose(h_hat_b1, ref_bf[:1], atol=2e-3, rtol=2e-3), "mismatch on B=1 path"

    print("KERNEL_OK")
</pallas_src>

<mosaic_0001>
module attributes {stable_mosaic.version = 11 : i64} {
  func.func @_h_hat_kernel(%arg0: i32, %arg1: i32, %arg2: memref<1x65x128xf32, #tpu.memory_space<vmem>>, %arg3: memref<1x1x128xf32, #tpu.memory_space<vmem>>, %arg4: memref<128x128xbf16, #tpu.memory_space<vmem>>, %arg5: memref<128x128xbf16, #tpu.memory_space<vmem>>, %arg6: memref<1x65x128xf32, #tpu.memory_space<vmem>>) attributes {dimension_semantics = [#tpu.dimension_semantics<parallel>, #tpu.dimension_semantics<parallel>], iteration_bounds = array<i64: 2, 1>, scalar_prefetch = 0 : i64, scratch_operands = 0 : i64, tpu.core_type = #tpu.core_type<tc>, window_params = [{transform_indices = @transform_0, window_bounds = array<i64: 1, 65, 128>}, {transform_indices = @transform_1, window_bounds = array<i64: 1, 1, 128>}, {pipeline_mode = #tpu.pipeline_mode<synchronous>, transform_indices = @transform_2, window_bounds = array<i64: 128, 128>}, {pipeline_mode = #tpu.pipeline_mode<synchronous>, transform_indices = @transform_3, window_bounds = array<i64: 128, 128>}, {transform_indices = @transform_4, window_bounds = array<i64: 1, 65, 128>}]} {
    %c0 = arith.constant 0 : index
    %c0_0 = arith.constant 0 : index
    %c0_1 = arith.constant 0 : index
    %0 = vector.load %arg2[%c0, %c0_0, %c0_1] : memref<1x65x128xf32, #tpu.memory_space<vmem>>, vector<1x65x128xf32>
    %1 = vector.shape_cast %0 : vector<1x65x128xf32> to vector<65x128xf32>
    %2 = arith.truncf %1 : vector<65x128xf32> to vector<65x128xbf16>
    %c0_2 = arith.constant 0 : index
    %c0_3 = arith.constant 0 : index
    %c0_4 = arith.constant 0 : index
    %3 = vector.load %arg3[%c0_2, %c0_3, %c0_4] : memref<1x1x128xf32, #tpu.memory_space<vmem>>, vector<1x1x128xf32>
    %4 = vector.shape_cast %3 : vector<1x1x128xf32> to vector<1x128xf32>
    %5 = arith.truncf %4 : vector<1x128xf32> to vector<1x128xbf16>
    %c0_5 = arith.constant 0 : index
    %c0_6 = arith.constant 0 : index
    %6 = vector.load %arg4[%c0_5, %c0_6] : memref<128x128xbf16, #tpu.memory_space<vmem>>, vector<128x128xbf16>
    %cst = arith.constant dense<0.000000e+00> : vector<65x128xf32>
    %7 = tpu.matmul %2, %6, %cst {dimension_numbers = #tpu.dot_dimension_numbers<[1], [0], [0], [1], [0, 0, 1, 1], [], []>} : vector<65x128xbf16>, vector<128x128xbf16>, vector<65x128xf32> -> vector<65x128xf32>
    %c0_7 = arith.constant 0 : index
    %c0_8 = arith.constant 0 : index
    %8 = vector.load %arg5[%c0_7, %c0_8] : memref<128x128xbf16, #tpu.memory_space<vmem>>, vector<128x128xbf16>
    %cst_9 = arith.constant dense<0.000000e+00> : vector<1x128xf32>
    %9 = tpu.matmul %5, %8, %cst_9 {dimension_numbers = #tpu.dot_dimension_numbers<[1], [0], [0], [1], [0, 0, 1, 1], [], []>} : vector<1x128xbf16>, vector<128x128xbf16>, vector<1x128xf32> -> vector<1x128xf32>
    %10 = vector.broadcast %9 : vector<1x128xf32> to vector<65x128xf32>
    %11 = arith.addf %7, %10 : vector<65x128xf32>
    %c0_10 = arith.constant 0 : index
    %c0_11 = arith.constant 0 : index
    %c0_12 = arith.constant 0 : index
    %12 = vector.load %arg6[%c0_10, %c0_11, %c0_12] : memref<1x65x128xf32, #tpu.memory_space<vmem>>, vector<1x65x128xf32>
    %13 = vector.shape_cast %12 : vector<1x65x128xf32> to vector<65x128xf32>
    %14 = vector.shape_cast %11 : vector<65x128xf32> to vector<1x65x128xf32>
    tpu.vector_store %arg6[%c0_10, %c0_11, %c0_12], %14 {strides = array<i32>} : memref<1x65x128xf32, #tpu.memory_space<vmem>>, vector<1x65x128xf32>,
    return
  }
  func.func @transform_0(%arg0: i32, %arg1: i32) -> (i32, i32, i32) {
    %c0_i32 = arith.constant 0 : i32
    %c0_i32_0 = arith.constant 0 : i32
    return %arg0, %arg1, %c0_i32 : i32, i32, i32
  }
  func.func @transform_1(%arg0: i32, %arg1: i32) -> (i32, i32, i32) {
    %c0_i32 = arith.constant 0 : i32
    %c0_i32_0 = arith.constant 0 : i32
    %c0_i32_1 = arith.constant 0 : i32
    return %arg0, %c0_i32, %c0_i32_0 : i32, i32, i32
  }
  func.func @transform_2(%arg0: i32, %arg1: i32) -> (i32, i32) {
    %c0_i32 = arith.constant 0 : i32
    %c0_i32_0 = arith.constant 0 : i32
    %c0_i32_1 = arith.constant 0 : i32
    return %c0_i32, %c0_i32_0 : i32, i32
  }
  func.func @transform_3(%arg0: i32, %arg1: i32) -> (i32, i32) {
    %c0_i32 = arith.constant 0 : i32
    %c0_i32_0 = arith.constant 0 : i32
    %c0_i32_1 = arith.constant 0 : i32
    return %c0_i32, %c0_i32_0 : i32, i32
  }
  func.func @transform_4(%arg0: i32, %arg1: i32) -> (i32, i32, i32) {
    %c0_i32 = arith.constant 0 : i32
    %c0_i32_0 = arith.constant 0 : i32
    return %arg0, %arg1, %c0_i32 : i32, i32, i32
  }
}

</mosaic_0001>

<llo_original>
// kernel: nns_decoder_h_hat.1
$region0: #{nns_decoder_h_hat.1}
  #allocation0 [shape = 'u32[]', space=smem, size = 0x4, offset = 0x4, fixed_abs, tag = 'smem constant byte address 0x4 - core index']
  #allocation1 [shape = 'u32[144,128]{1,0:T(1,128)}', space=vmem, size = 0x12000, scoped, tag = 'internal scratch']
  %s0 = inlined_call_operand.vmem [shape: f32[2,65,128], index: 0, kind: input, shape index: {}]
  %s1 = inlined_call_operand.vmem [shape: f32[2,1,128], index: 1, kind: input, shape index: {}]
  %s2 = inlined_call_operand.vmem [shape: bf16[128,128], index: 2, kind: input, shape index: {}]
  %s3 = inlined_call_operand.vmem [shape: bf16[128,128], index: 3, kind: input, shape index: {}]
  %s4 = inlined_call_operand.vmem [shape: f32[2,65,128], index: 4, kind: output, shape index: {}]
  %s5 = sld [smem:[#allocation0]]
  $region49: #{nns_decoder_h_hat.1} parent=0
    _
  %s7 = ssub.s32 1, %s5
  %s8 = scalar_select 0, %s7, %s5
  loop: start=0, step=1, limit=4
  $region2: #{nns_decoder_h_hat.1} parent=0 // loop_pre_header
    _
  $region3: #{nns_decoder_h_hat.1} parent=0 // loop_header
    %s10 = sphi 0, %s14
    %p11 = scmp.ge.s32.totalorder %s10, 4
    %s17 = sphi 0, %s29
    %s18 = sphi 0, %s25
    %s19 = sphi 0, %s17
    %s20 = sphi 0, %s18
    %s21 = sphi 0, %s19
    %s22 = sphi 0, %s20
    %s34 = sphi 0, %s36
    %s37 = sphi 0, %s34
    %s38 = sphi 0, %s37
    %s54 = sphi 0, %s38
    %s60 = sphi 0, %s62
    %s63 = sphi 0, %s60
    %s64 = sphi 0, %s63
    %s80 = sphi 0, %s64
    %s84 = sphi 0, %s84
    %s86 = sphi 0, %s84
    %s87 = sphi 0, %s86
    %s101 = sphi 0, %s87
    %s105 = sphi 0, %s105
    %s107 = sphi 0, %s105
    %s108 = sphi 0, %s107
    %s122 = sphi 0, %s108
    %s130 = sphi 0, %s132
    %s133 = sphi 0, %s130
    %s134 = sphi 0, %s133
    %s150 = sphi 0, %s134
  $region4: #{nns_decoder_h_hat.1} parent=0 // loop_header_branch
    %13 = sbr.rel (%p11) target = $region8
  $region5: #{nns_decoder_h_hat.1} parent=0 // loop_body
    %s15 = ssub.s32 %s10, 1
    %s16 = ssub.s32 %s10, 2
    %s23 = sadd.s32 1, %s18
    %p24 = scmp.ge.s32.totalorder %s23, 1
    %s25 = scalar_select %p24, 0, %s23
    %s26 = sadd.s32 1, %s17
    %s27 = scalar_select %p24, %s26, %s17
    %p28 = scmp.ge.s32.totalorder %s27, 2
    %s29 = scalar_select %p28, 0, %s27
    %s30 = ssub.s32 %s17, %s29
    %s31 = ssub.s32 %s18, %s25
    %s32 = sor.u32 %s30, %s31
    %p33 = scmp.eq.s32.totalorder %s32, 0
    %s35 = sadd.s32 %s34, 1
    %s36 = scalar_select %p33, %s34, %s35
    %p39 = pneg %p33
    %p40 = scmp.eq.s32.totalorder %s10, 1
    %p41 = por %p39, %p40
    %p42 = scmp.ne.s32.totalorder %s34, %s37
    %p43 = scmp.eq.s32.totalorder %s10, 0
    %p44 = por %p42, %p43
    %p45 = scmp.ne.s32.totalorder %s34, %s37
    %p46 = scmp.eq.s32.totalorder %s15, 1
    %p47 = por %p45, %p46
    %p48 = scmp.ne.s32.totalorder %s37, %s38
    %p49 = scmp.eq.s32.totalorder %s15, 0
    %p50 = por %p48, %p49
    %p51 = scmp.ne.s32.totalorder %s37, %s38
    %p52 = scmp.eq.s32.totalorder %s16, 1
    %p53 = por %p51, %p52
    %p55 = scmp.ne.s32.totalorder %s38, %s54
    %p56 = scmp.eq.s32.totalorder %s16, 0
    %p57 = por %p55, %p56
    %s58 = ssub.s32 %s17, %s29
    %p59 = scmp.eq.s32.totalorder %s58, 0
    %s61 = sadd.s32 %s60, 1
    %s62 = scalar_select %p59, %s60, %s61
    %p65 = pneg %p59
    %p66 = scmp.eq.s32.totalorder %s10, 1
    %p67 = por %p65, %p66
    %p68 = scmp.ne.s32.totalorder %s60, %s63
    %p69 = scmp.eq.s32.totalorder %s10, 0
    %p70 = por %p68, %p69
    %p71 = scmp.ne.s32.totalorder %s60, %s63
    %p72 = scmp.eq.s32.totalorder %s15, 1
    %p73 = por %p71, %p72
    %p74 = scmp.ne.s32.totalorder %s63, %s64
    %p75 = scmp.eq.s32.totalorder %s15, 0
    %p76 = por %p74, %p75
    %p77 = scmp.ne.s32.totalorder %s63, %s64
    %p78 = scmp.eq.s32.totalorder %s16, 1
    %p79 = por %p77, %p78
    %p81 = scmp.ne.s32.totalorder %s64, %s80
    %p82 = scmp.eq.s32.totalorder %s16, 0
    %p83 = por %p81, %p82
    %s85 = sadd.s32 %s84, 1
    %p88 = scmp.eq.s32.totalorder %s10, 1
    %p89 = scmp.ne.s32.totalorder %s84, %s86
    %p90 = scmp.eq.s32.totalorder %s10, 0
    %p91 = por %p89, %p90
    %p92 = scmp.ne.s32.totalorder %s84, %s86
    %p93 = scmp.eq.s32.totalorder %s15, 1
    %p94 = por %p92, %p93
    %p95 = scmp.ne.s32.totalorder %s86, %s87
    %p96 = scmp.eq.s32.totalorder %s15, 0
    %p97 = por %p95, %p96
    %p98 = scmp.ne.s32.totalorder %s86, %s87
    %p99 = scmp.eq.s32.totalorder %s16, 1
    %p100 = por %p98, %p99
    %p102 = scmp.ne.s32.totalorder %s87, %s101
    %p103 = scmp.eq.s32.totalorder %s16, 0
    %p104 = por %p102, %p103
    %s106 = sadd.s32 %s105, 1
    %p109 = scmp.eq.s32.totalorder %s10, 1
    %p110 = scmp.ne.s32.totalorder %s105, %s107
    %p111 = scmp.eq.s32.totalorder %s10, 0
    %p112 = por %p110, %p111
    %p113 = scmp.ne.s32.totalorder %s105, %s107
    %p114 = scmp.eq.s32.totalorder %s15, 1
    %p115 = por %p113, %p114
    %p116 = scmp.ne.s32.totalorder %s107, %s108
    %p117 = scmp.eq.s32.totalorder %s15, 0
    %p118 = por %p116, %p117
    %p119 = scmp.ne.s32.totalorder %s107, %s108
    %p120 = scmp.eq.s32.totalorder %s16, 1
    %p121 = por %p119, %p120
    %p123 = scmp.ne.s32.totalorder %s108, %s122
    %p124 = scmp.eq.s32.totalorder %s16, 0
    %p125 = por %p123, %p124
    %s126 = ssub.s32 %s17, %s29
    %s127 = ssub.s32 %s18, %s25
    %s128 = sor.u32 %s126, %s127
    %p129 = scmp.eq.s32.totalorder %s128, 0
    %s131 = sadd.s32 %s130, 1
    %s132 = scalar_select %p129, %s130, %s131
    %p135 = pneg %p129
    %p136 = scmp.eq.s32.totalorder %s10, 1
    %p137 = por %p135, %p136
    %p138 = scmp.ne.s32.totalorder %s130, %s133
    %p139 = scmp.eq.s32.totalorder %s10, 0
    %p140 = por %p138, %p139
    %p141 = scmp.ne.s32.totalorder %s130, %s133
    %p142 = scmp.eq.s32.totalorder %s15, 1
    %p143 = por %p141, %p142
    %p144 = scmp.ne.s32.totalorder %s133, %s134
    %p145 = scmp.eq.s32.totalorder %s15, 0
    %p146 = por %p144, %p145
    %p147 = scmp.ne.s32.totalorder %s133, %s134
    %p148 = scmp.eq.s32.totalorder %s16, 1
    %p149 = por %p147, %p148
    %p151 = scmp.ne.s32.totalorder %s134, %s150
    %p152 = scmp.eq.s32.totalorder %s16, 0
    %p153 = por %p151, %p152
    %p154 = scmp.le.s32.totalorder 1, %s10
    %p155 = scmp.lt.s32.totalorder %s10, 3
    %p156 = pnand %p154, %p155
    %p157 = pneg %p156
    // Predicated region
    $region9: #{nns_decoder_h_hat.1} parent=5 // pred_check
      _
    $region10: #{nns_decoder_h_hat.1} parent=5 // pred_check_branch
      %159 = sbr.rel (%p156) target = $region12
    $region11: #{nns_decoder_h_hat.1} parent=5 // pred_region
      %s160 = ssub.s32 %s10, 1
      // Predicated region
      $region13: #{nns_decoder_h_hat.1} parent=11 // pred_check
        %p161 = pneg %p97
      $region14: #{nns_decoder_h_hat.1} parent=11 // pred_check_branch
        %163 = sbr.rel (%p161) target = $region16
      $region15: #{nns_decoder_h_hat.1} parent=11 // pred_region
        _
      $region16: #{nns_decoder_h_hat.1} parent=11 // pred_fallthru
        _
      // Predicated region
      $region17: #{nns_decoder_h_hat.1} parent=11 // pred_check
        %p164 = pneg %p118
      $region18: #{nns_decoder_h_hat.1} parent=11 // pred_check_branch
        %166 = sbr.rel (%p164) target = $region20
      $region19: #{nns_decoder_h_hat.1} parent=11 // pred_region
        _
      $region20: #{nns_decoder_h_hat.1} parent=11 // pred_fallthru
        _
    $region12: #{nns_decoder_h_hat.1} parent=5 // pred_fallthru
      _
    %p167 = scmp.lt.s32.totalorder %s10, 2
    // Predicated region
    $region21: #{nns_decoder_h_hat.1} parent=5 // pred_check
      %p168 = pneg %p167
    $region22: #{nns_decoder_h_hat.1} parent=5 // pred_check_branch
      %170 = sbr.rel (%p168) target = $region24
    $region23: #{nns_decoder_h_hat.1} parent=5 // pred_region
      // Predicated region
      $region25: #{nns_decoder_h_hat.1} parent=23 // pred_check
        %p171 = pneg %p44
      $region26: #{nns_decoder_h_hat.1} parent=23 // pred_check_branch
        %173 = sbr.rel (%p171) target = $region28
      $region27: #{nns_decoder_h_hat.1} parent=23 // pred_region
        %s174 = smul.u32 9, %s18
        %p175 = scmp.lt.s32.totalorder %s17, 1
        %s176 = scalar_select %p175, %s17, 1
        %p177 = scmp.lt.s32.totalorder %s174, 8
        %s178 = scalar_select %p177, %s174, 8
        %s179 = smul.addr %s176, 9
        %s180 = sadd.s32 %s178, %s179
        %s181 = smul.addr %s180, 8
        %s182 = scalar_lea.vmem %s0, %s181
        %s183 = smul.u32 9, %s18
      $region28: #{nns_decoder_h_hat.1} parent=23 // pred_fallthru
        _
      // Predicated region
      $region29: #{nns_decoder_h_hat.1} parent=23 // pred_check
        %p184 = pneg %p70
      $region30: #{nns_decoder_h_hat.1} parent=23 // pred_check_branch
        %186 = sbr.rel (%p184) target = $region32
      $region31: #{nns_decoder_h_hat.1} parent=23 // pred_region
        %p187 = scmp.lt.s32.totalorder %s17, 1
        %s188 = scalar_select %p187, %s17, 1
        %s189 = scalar_lea.vmem %s1, %s188
      $region32: #{nns_decoder_h_hat.1} parent=23 // pred_fallthru
        _
    $region24: #{nns_decoder_h_hat.1} parent=5 // pred_fallthru
      _
    %p190 = scmp.le.s32.totalorder 1, %s10
    %p191 = scmp.lt.s32.totalorder %s10, 3
    %p192 = pnand %p190, %p191
    %p193 = pneg %p192
    // Predicated region
    $region33: #{nns_decoder_h_hat.1} parent=5 // pred_check
      _
    $region34: #{nns_decoder_h_hat.1} parent=5 // pred_check_branch
      %195 = sbr.rel (%p192) target = $region36
    $region35: #{nns_decoder_h_hat.1} parent=5 // pred_region
      %s196 = ssub.s32 %s10, 1
      %s197 = smul.u32 9, %s20
      %p198 = scmp.lt.s32.totalorder %s19, 1
      %s199 = scalar_select %p198, %s19, 1
      %p200 = scmp.lt.s32.totalorder %s197, 8
      %s201 = scalar_select %p200, %s197, 8
      %s202 = smul.addr %s199, 9
      %s203 = sadd.s32 %s201, %s202
      %s204 = smul.addr %s203, 8
      %s205 = scalar_lea.vmem %s0, %s204
      %p206 = pneg %p50
      %p207 = pneg %p47
      %p208 = scmp.lt.s32.totalorder %s19, 1
      %s209 = scalar_select %p208, %s19, 1
      %s210 = scalar_lea.vmem %s1, %s209
      %p211 = pneg %p76
      %p212 = pneg %p73
      %p213 = pneg %p97
      %p214 = pneg %p94
      %p215 = pneg %p118
      %p216 = pneg %p115
      %p217 = pneg %p146
      %p218 = pneg %p143
      %s219 = smul.u32 9, %s20
      %p220 = scmp.lt.s32.totalorder %s19, 1
      %s221 = scalar_select %p220, %s19, 1
      %p222 = scmp.lt.s32.totalorder %s219, 8
      %s223 = scalar_select %p222, %s219, 8
      %s224 = smul.addr %s221, 9
      %s225 = sadd.s32 %s223, %s224
      %s226 = smul.addr %s225, 8
      %s227 = scalar_lea.vmem %s4, %s226
      %s228 = smul.u32 9, %s20
      %p229 = scmp.lt.s32.totalorder %s19, 1
      %s230 = scalar_select %p229, %s19, 1
      %p231 = scmp.lt.s32.totalorder %s228, 8
      %s232 = scalar_select %p231, %s228, 8
      %s233 = smul.addr %s230, 9
      %s234 = sadd.s32 %s232, %s233
      %s235 = smul.addr %s234, 8
      %s236 = scalar_lea.vmem %s0, %s235
      %s237 = smul.u32 9, %s20
      %p238 = scmp.lt.s32.totalorder %s19, 1
      %s239 = scalar_select %p238, %s19, 1
      %s240 = scalar_lea.vmem %s1, %s239
      %s241 = smul.u32 9, %s20
      %p242 = scmp.lt.s32.totalorder %s19, 1
      %s243 = scalar_select %p242, %s19, 1
      %p244 = scmp.lt.s32.totalorder %s241, 8
      %s245 = scalar_select %p244, %s241, 8
      %s246 = smul.addr %s243, 9
      %s247 = sadd.s32 %s245, %s246
      %s248 = smul.addr %s247, 8
      %s249 = scalar_lea.vmem %s4, %s248
      %s250 = smul.u32 9, %s20
      %v252 = vld [vmem:[%s236] sm:$0xff]
      %v253 = vld [vmem:[%s236 + $0x8] sm:$0xff]
      %v254 = vld [vmem:[%s236 + $0x10] sm:$0xff]
      %v255 = vld [vmem:[%s236 + $0x18] sm:$0xff]
      %v256 = vld [vmem:[%s236 + $0x20] sm:$0xff]
      %v257 = vld [vmem:[%s236 + $0x28] sm:$0xff]
      %v258 = vld [vmem:[%s236 + $0x30] sm:$0xff]
      %v259 = vld [vmem:[%s236 + $0x38] sm:$0xff]
      %v260 = vld [vmem:[%s236 + $0x40] sm:$0x1]
      %v261 = vpack.c.bf16 %v253, %v252
      %v262 = vpack.c.bf16 %v255, %v254
      %v263 = vpack.c.bf16 %v257, %v256
      %v264 = vpack.c.bf16 %v259, %v258
      %v265 = vpack.c.bf16 %v260, %v260
      %v266 = vld [vmem:[%s240] sm:$0x1]
      %v267 = vpack.c.bf16 %v266, %v266
      %v268 = vld [vmem:[%s2] sm:$0xf]
      %v269 = vld [vmem:[%s2 + $0x4] sm:$0xf]
      %v270 = vld [vmem:[%s2 + $0x8] sm:$0xf]
      %v271 = vld [vmem:[%s2 + $0xc] sm:$0xf]
      %v272 = vld [vmem:[%s2 + $0x10] sm:$0xf]
      %v273 = vld [vmem:[%s2 + $0x14] sm:$0xf]
      %v274 = vld [vmem:[%s2 + $0x18] sm:$0xf]
      %v275 = vld [vmem:[%s2 + $0x1c] sm:$0xf]
      %v276 = vld [vmem:[%s2 + $0x20] sm:$0xf]
      %v277 = vld [vmem:[%s2 + $0x24] sm:$0xf]
      %v278 = vld [vmem:[%s2 + $0x28] sm:$0xf]
      %v279 = vld [vmem:[%s2 + $0x2c] sm:$0xf]
      %v280 = vld [vmem:[%s2 + $0x30] sm:$0xf]
      %v281 = vld [vmem:[%s2 + $0x34] sm:$0xf]
      %v282 = vld [vmem:[%s2 + $0x38] sm:$0xf]
      %v283 = vld [vmem:[%s2 + $0x3c] sm:$0xf]
      %v284 = vld [vmem:[%s3] sm:$0xf]
      %v285 = vld [vmem:[%s3 + $0x4] sm:$0xf]
      %v286 = vld [vmem:[%s3 + $0x8] sm:$0xf]
      %v287 = vld [vmem:[%s3 + $0xc] sm:$0xf]
      %v288 = vld [vmem:[%s3 + $0x10] sm:$0xf]
      %v289 = vld [vmem:[%s3 + $0x14] sm:$0xf]
      %v290 = vld [vmem:[%s3 + $0x18] sm:$0xf]
      %v291 = vld [vmem:[%s3 + $0x1c] sm:$0xf]
      %v292 = vld [vmem:[%s3 + $0x20] sm:$0xf]
      %v293 = vld [vmem:[%s3 + $0x24] sm:$0xf]
      %v294 = vld [vmem:[%s3 + $0x28] sm:$0xf]
      %v295 = vld [vmem:[%s3 + $0x2c] sm:$0xf]
      %v296 = vld [vmem:[%s3 + $0x30] sm:$0xf]
      %v297 = vld [vmem:[%s3 + $0x34] sm:$0xf]
      %v298 = vld [vmem:[%s3 + $0x38] sm:$0xf]
      %v299 = vld [vmem:[%s3 + $0x3c] sm:$0xf]
      %v316 = vunpack.c.l.b16 %v284
      %v317 = vunpack.c.l.b16 %v285
      %v318 = vunpack.c.l.b16 %v286
      %v319 = vunpack.c.l.b16 %v287
      %v320 = vunpack.c.l.b16 %v288
      %v321 = vunpack.c.l.b16 %v289
      %v322 = vunpack.c.l.b16 %v290
      %v323 = vunpack.c.l.b16 %v291
      %v324 = vunpack.c.l.b16 %v292
      %v325 = vunpack.c.l.b16 %v293
      %v326 = vunpack.c.l.b16 %v294
      %v327 = vunpack.c.l.b16 %v295
      %v328 = vunpack.c.l.b16 %v296
      %v329 = vunpack.c.l.b16 %v297
      %v330 = vunpack.c.l.b16 %v298
      %v331 = vunpack.c.l.b16 %v299
      %v332 = vpack.c.b16 %v317, %v316
      %v333 = vpack.c.b16 %v319, %v318
      %v334 = vpack.c.b16 %v321, %v320
      %v335 = vpack.c.b16 %v323, %v322
      %v336 = vpack.c.b16 %v325, %v324
      %v337 = vpack.c.b16 %v327, %v326
      %v338 = vpack.c.b16 %v329, %v328
      %v339 = vpack.c.b16 %v331, %v330
      %348 = vmatprep.subr.bf16.mxu0 0
      %349 = vmatpush1.bf16.msra.mxu0 %v339
      %350 = vmatprep.subr.bf16.mxu0 0
      %351 = vmatpush1.bf16.msra.mxu0 %v338
      %352 = vmatprep.subr.bf16.mxu0 0
      %353 = vmatpush1.bf16.msra.mxu0 %v337
      %354 = vmatprep.subr.bf16.mxu0 0
      %355 = vmatpush1.bf16.msra.mxu0 %v336
      %356 = vmatprep.subr.bf16.mxu0 0
      %357 = vmatpush1.bf16.msra.mxu0 %v335
      %358 = vmatprep.subr.bf16.mxu0 0
      %359 = vmatpush1.bf16.msra.mxu0 %v334
      %360 = vmatprep.subr.bf16.mxu0 0
      %361 = vmatpush1.bf16.msra.mxu0 %v333
      %362 = vmatprep.subr.bf16.mxu0 0
      %363 = vmatpush1.bf16.msra.mxu0 %v332
      %364 = vmatprep.subr.bf16.mxu0 0
      %365 = vmatpush2.bf16.msra.mxu0 0
      %366 = vmatprep.subr.bf16.mxu0 0
      %367 = vmatpush2.bf16.msra.mxu0 0
      %368 = vmatprep.subr.bf16.mxu0 0
      %369 = vmatpush2.bf16.msra.mxu0 0
      %370 = vmatprep.subr.bf16.mxu0 0
      %371 = vmatpush2.bf16.msra.mxu0 0
      %372 = vmatprep.subr.bf16.mxu0 0
      %373 = vmatpush2.bf16.msra.mxu0 0
      %374 = vmatprep.subr.bf16.mxu0 0
      %375 = vmatpush2.bf16.msra.mxu0 0
      %376 = vmatprep.subr.bf16.mxu0 0
      %377 = vmatpush2.bf16.msra.mxu0 0
      %378 = vmatprep.subr.bf16.mxu0 0
      %379 = vmatpush2.bf16.msra.mxu0 0
      %380 = vmatprep.mubr.bf16.mxu0 0
      %381 = vmatmul.mubr.bf16.gmra.mxu0 %v267
      %v382 = vpop.f32.mrf.mxu0
      %v383 = vadd.f32 0.0, %v382
      %v384 = vpop.f32.mrf.mxu0
      %v385 = vpop.f32.mrf.mxu0
      %v386 = vpop.f32.mrf.mxu0
      %387 = vdwg.mxu0
      %v388 = vlaneseq
      %v389 = vshrl.u32 %v388, 7
      %v390 = vsub.s32 0, %v389
      %v391 = vrot.slane %v383, %v390
      %v408 = vunpack.c.l.b16 %v268
      %v409 = vunpack.c.l.b16 %v269
      %v410 = vunpack.c.l.b16 %v270
      %v411 = vunpack.c.l.b16 %v271
      %v412 = vunpack.c.l.b16 %v272
      %v413 = vunpack.c.l.b16 %v273
      %v414 = vunpack.c.l.b16 %v274
      %v415 = vunpack.c.l.b16 %v275
      %v416 = vunpack.c.l.b16 %v276
      %v417 = vunpack.c.l.b16 %v277
      %v418 = vunpack.c.l.b16 %v278
      %v419 = vunpack.c.l.b16 %v279
      %v420 = vunpack.c.l.b16 %v280
      %v421 = vunpack.c.l.b16 %v281
      %v422 = vunpack.c.l.b16 %v282
      %v423 = vunpack.c.l.b16 %v283
      %v424 = vpack.c.b16 %v409, %v408
      %v425 = vpack.c.b16 %v411, %v410
      %v426 = vpack.c.b16 %v413, %v412
      %v427 = vpack.c.b16 %v415, %v414
      %v428 = vpack.c.b16 %v417, %v416
      %v429 = vpack.c.b16 %v419, %v418
      %v430 = vpack.c.b16 %v421, %v420
      %v431 = vpack.c.b16 %v423, %v422
      %440 = vmatprep.subr.bf16.mxu0 0
      %441 = vmatpush1.bf16.msra.mxu0 %v431
      %442 = vmatprep.subr.bf16.mxu0 0
      %443 = vmatpush1.bf16.msra.mxu0 %v430
      %444 = vmatprep.subr.bf16.mxu0 0
      %445 = vmatpush1.bf16.msra.mxu0 %v429
      %446 = vmatprep.subr.bf16.mxu0 0
      %447 = vmatpush1.bf16.msra.mxu0 %v428
      %448 = vmatprep.subr.bf16.mxu0 0
      %449 = vmatpush1.bf16.msra.mxu0 %v427
      %450 = vmatprep.subr.bf16.mxu0 0
      %451 = vmatpush1.bf16.msra.mxu0 %v426
      %452 = vmatprep.subr.bf16.mxu0 0
      %453 = vmatpush1.bf16.msra.mxu0 %v425
      %454 = vmatprep.subr.bf16.mxu0 0
      %455 = vmatpush1.bf16.msra.mxu0 %v424
      %456 = vmatprep.subr.bf16.mxu0 0
      %457 = vmatpush2.bf16.msra.mxu0 0
      %458 = vmatprep.subr.bf16.mxu0 0
      %459 = vmatpush2.bf16.msra.mxu0 0
      %460 = vmatprep.subr.bf16.mxu0 0
      %461 = vmatpush2.bf16.msra.mxu0 0
      %462 = vmatprep.subr.bf16.mxu0 0
      %463 = vmatpush2.bf16.msra.mxu0 0
      %464 = vmatprep.subr.bf16.mxu0 0
      %465 = vmatpush2.bf16.msra.mxu0 0
      %466 = vmatprep.subr.bf16.mxu0 0
      %467 = vmatpush2.bf16.msra.mxu0 0
      %468 = vmatprep.subr.bf16.mxu0 0
      %469 = vmatpush2.bf16.msra.mxu0 0
      %470 = vmatprep.subr.bf16.mxu0 0
      %471 = vmatpush2.bf16.msra.mxu0 0
      %472 = vmatprep.mubr.bf16.mxu0 0
      %473 = vmatmul.mubr.bf16.gmra.mxu0 %v261
      %v474 = vpop.f32.mrf.mxu0
      %v475 = vadd.f32 %v391, %v474
      %v476 = vpop.f32.mrf.mxu0
      %v477 = vpop.f32.mrf.mxu0
      %v478 = vadd.f32 %v391, %v477
      %v479 = vpop.f32.mrf.mxu0
      %480 = vmatprep.mubr.bf16.mxu0 0
      %481 = vmatmul.mubr.bf16.gmra.mxu0 %v262
      %v482 = vpop.f32.mrf.mxu0
      %v483 = vadd.f32 %v391, %v482
      %v484 = vpop.f32.mrf.mxu0
      %v485 = vpop.f32.mrf.mxu0
      %v486 = vadd.f32 %v391, %v485
      %v487 = vpop.f32.mrf.mxu0
      %488 = vmatprep.mubr.bf16.mxu0 0
      %489 = vmatmul.mubr.bf16.gmra.mxu0 %v263
      %v490 = vpop.f32.mrf.mxu0
      %v491 = vadd.f32 %v391, %v490
      %v492 = vpop.f32.mrf.mxu0
      %v493 = vpop.f32.mrf.mxu0
      %v494 = vadd.f32 %v391, %v493
      %v495 = vpop.f32.mrf.mxu0
      %496 = vmatprep.mubr.bf16.mxu0 0
      %497 = vmatmul.mubr.bf16.gmra.mxu0 %v264
      %v498 = vpop.f32.mrf.mxu0
      %v499 = vadd.f32 %v391, %v498
      %v500 = vpop.f32.mrf.mxu0
      %v501 = vpop.f32.mrf.mxu0
      %v502 = vadd.f32 %v391, %v501
      %v503 = vpop.f32.mrf.mxu0
      %504 = vmatprep.mubr.bf16.mxu0 0
      %505 = vmatmul.mubr.bf16.gmra.mxu0 %v265
      %v506 = vpop.f32.mrf.mxu0
      %v507 = vadd.f32 %v391, %v506
      %v508 = vpop.f32.mrf.mxu0
      %v509 = vpop.f32.mrf.mxu0
      %v510 = vpop.f32.mrf.mxu0
      %511 = vdwg.mxu0
      %512 = vst [vmem:[%s249] sm:$0xff] %v475
      %513 = vst [vmem:[%s249 + $0x8] sm:$0xff] %v478
      %514 = vst [vmem:[%s249 + $0x10] sm:$0xff] %v483
      %515 = vst [vmem:[%s249 + $0x18] sm:$0xff] %v486
      %516 = vst [vmem:[%s249 + $0x20] sm:$0xff] %v491
      %517 = vst [vmem:[%s249 + $0x28] sm:$0xff] %v494
      %518 = vst [vmem:[%s249 + $0x30] sm:$0xff] %v499
      %519 = vst [vmem:[%s249 + $0x38] sm:$0xff] %v502
      %520 = vst [vmem:[%s249 + $0x40] sm:$0x1] %v507
      %s521 = smul.u32 9, %s20
      %p522 = scmp.lt.s32.totalorder %s19, 1
      %s523 = scalar_select %p522, %s19, 1
      %p524 = scmp.lt.s32.totalorder %s521, 8
      %s525 = scalar_select %p524, %s521, 8
      %s526 = smul.addr %s523, 9
      %s527 = sadd.s32 %s525, %s526
      %s528 = smul.addr %s527, 8
      %s529 = scalar_lea.vmem %s4, %s528
      // Predicated region
      $region37: #{nns_decoder_h_hat.1} parent=35 // pred_check
        %p530 = pneg %p143
      $region38: #{nns_decoder_h_hat.1} parent=35 // pred_check_branch
        %532 = sbr.rel (%p530) target = $region40
      $region39: #{nns_decoder_h_hat.1} parent=35 // pred_region
        %s533 = smul.u32 9, %s20
      $region40: #{nns_decoder_h_hat.1} parent=35 // pred_fallthru
        _
    $region36: #{nns_decoder_h_hat.1} parent=5 // pred_fallthru
      _
    %p534 = scmp.le.s32.totalorder 2, %s10
    // Predicated region
    $region41: #{nns_decoder_h_hat.1} parent=5 // pred_check
      %p535 = pneg %p534
    $region42: #{nns_decoder_h_hat.1} parent=5 // pred_check_branch
      %537 = sbr.rel (%p535) target = $region44
    $region43: #{nns_decoder_h_hat.1} parent=5 // pred_region
      %s538 = ssub.s32 %s10, 2
      // Predicated region
      $region45: #{nns_decoder_h_hat.1} parent=43 // pred_check
        %p539 = pneg %p149
      $region46: #{nns_decoder_h_hat.1} parent=43 // pred_check_branch
        %541 = sbr.rel (%p539) target = $region48
      $region47: #{nns_decoder_h_hat.1} parent=43 // pred_region
        %s542 = smul.u32 9, %s22
        %p543 = scmp.lt.s32.totalorder %s21, 1
        %s544 = scalar_select %p543, %s21, 1
        %p545 = scmp.lt.s32.totalorder %s542, 8
        %s546 = scalar_select %p545, %s542, 8
        %s547 = smul.addr %s544, 9
        %s548 = sadd.s32 %s546, %s547
        %s549 = smul.addr %s548, 8
        %s550 = scalar_lea.vmem %s4, %s549
      $region48: #{nns_decoder_h_hat.1} parent=43 // pred_fallthru
        _
    $region44: #{nns_decoder_h_hat.1} parent=5 // pred_fallthru
      _
  $region6: #{nns_decoder_h_hat.1} parent=0 // loop_footer
    %s14 = sadd.s32 1, %s10
  $region7: #{nns_decoder_h_hat.1} parent=0 // loop_footer_branch
    %9 = sbr.rel target = $region3
  $region8: #{nns_decoder_h_hat.1} parent=0 // loop_exit
    _

</llo_original>
